<compile_context>
chip_gen: v5e
topology: v5e:2x2
jax: 0.10.0
libtpu: 0.0.40
codegen_flags: <defaults>
</compile_context>

<pallas_src>
import functools
import math

import jax
import jax.numpy as jnp
from jax.experimental import pallas as pl
from jax.experimental.pallas import tpu as pltpu


def ln_kernel(x_ref, ms_ref, ss_ref, o_ref, *, eps, d):
    """Fused custom LayerNorm on one (TM, D) row block.

    x_ref : (TM, D)  input rows
    ms_ref: (1, D)   mean_scale (additive, broadcast over rows, f32)
    ss_ref: (1, D)   std_scale  (multiplicative, broadcast over rows, f32)
    o_ref : (TM, D)  output rows
    """
    x = x_ref[...].astype(jnp.float32)

    # Two-pass statistics (numerically safe; x is VMEM resident so the second
    # pass is free for this HBM-bound kernel).
    mean = jnp.sum(x, axis=-1, keepdims=True) * (1.0 / d)
    xc = x - mean
    var = jnp.sum(xc * xc, axis=-1, keepdims=True) * (1.0 / max(d - 1, 1))
    std = jnp.sqrt(var)

    # 1 / (std + eps): EUP approx reciprocal + one Newton step -> f32 accuracy.
    denom = std + eps
    inv = pl.reciprocal(denom, approx=True)
    inv = inv * (2.0 - denom * inv)

    y = ss_ref[...] * (xc * inv) + ms_ref[...]
    o_ref[...] = y.astype(o_ref.dtype)


def _sublane_multiple(dtype):
    # 8 sublanes per vreg for 32-bit, 16 for bf16, 32 for int8/fp8.
    itemsize = jnp.dtype(dtype).itemsize
    return max(8, 32 // max(itemsize, 1))


def _choose_tm(n_rows, d, dtype,
               vmem_block_budget_bytes=8 << 20,
               min_grid_steps=4):
    """Pick the row-tile size.

    Budget: in + out blocks, double-buffered by the pipeline -> 4 * tm * d *
    itemsize bytes must stay under `vmem_block_budget_bytes` (8 MiB default,
    safe under every generation's default scoped-VMEM limit).  Also keep at
    least `min_grid_steps` grid steps when n_rows allows, so v7x's two
    TensorCores both get work along the "parallel" grid axis.
    """
    sub = _sublane_multiple(dtype)
    itemsize = jnp.dtype(dtype).itemsize

    tm = max(sub, vmem_block_budget_bytes // (4 * d * itemsize))
    tm = min(tm, 2048)
    # Keep the grid >= min_grid_steps steps when possible (megacore).
    tm = min(tm, max(sub, pl.cdiv(n_rows, min_grid_steps)))
    tm = min(tm, max(sub, n_rows))
    tm = max(sub, (tm // sub) * sub)
    return tm


def layer_norm(x, mean_scale, std_scale, *, eps=1e-9, block_rows=None):
    """Custom LN over the last dim of x (any leading shape). Returns x.shape."""
    orig_shape = x.shape
    D = orig_shape[-1]
    n = math.prod(orig_shape[:-1]) if len(orig_shape) > 1 else 1

    x2 = x.reshape(n, D)
    tm = block_rows if block_rows is not None else _choose_tm(n, D, x.dtype)
    grid = (pl.cdiv(n, tm),)   # partial last block handled by Pallas; no pad.

    ms2 = mean_scale.reshape(1, D).astype(jnp.float32)
    ss2 = std_scale.reshape(1, D).astype(jnp.float32)

    out = pl.pallas_call(
        functools.partial(ln_kernel, eps=eps, d=D),
        out_shape=jax.ShapeDtypeStruct((n, D), x.dtype),
        grid=grid,
        in_specs=[
            pl.BlockSpec((tm, D), lambda i: (i, 0)),   # x row block
            pl.BlockSpec((1, D), lambda i: (0, 0)),    # mean_scale (resident)
            pl.BlockSpec((1, D), lambda i: (0, 0)),    # std_scale  (resident)
        ],
        out_specs=pl.BlockSpec((tm, D), lambda i: (i, 0)),
        compiler_params=pltpu.CompilerParams(
            dimension_semantics=("parallel",)),
    )(x2, ms2, ss2)

    return out.reshape(orig_shape)


def _reference(x, mean_scale, std_scale, eps=1e-9):
    """Pure-JAX reference matching the PyTorch LN.forward."""
    xf = x.astype(jnp.float32)
    mean = jnp.mean(xf, axis=-1, keepdims=True)
    var = jnp.sum((xf - mean) ** 2, axis=-1, keepdims=True) / (x.shape[-1] - 1)
    std = jnp.sqrt(var)
    y = std_scale * ((xf - mean) / (std + eps)) + mean_scale
    return y.astype(x.dtype)


if __name__ == "__main__":
    D = 512  # module default
    key = jax.random.PRNGKey(0)
    kx1, kx2, kms, kss = jax.random.split(key, 4)

    # Non-trivial (but deterministic) scales to exercise the broadcasts.
    mean_scale = 1.0 + 0.1 * jax.random.normal(kms, (D,), dtype=jnp.float32)
    std_scale = 1.0 + 0.1 * jax.random.normal(kss, (D,), dtype=jnp.float32)

    # Case 1: (B, S, D) with row count divisible by the tile (auto TM).
    x1 = jax.random.normal(kx1, (2, 8, D), dtype=jnp.float32)
    out1 = jax.block_until_ready(layer_norm(x1, mean_scale, std_scale))
    ref1 = _reference(x1, mean_scale, std_scale)
    assert out1.shape == x1.shape, out1.shape
    assert jnp.allclose(out1, ref1, atol=1e-4, rtol=1e-4), "mismatch (case 1)"

    # Case 2: ragged row count -> exercises the partial last block (no pad).
    x2 = jax.random.normal(kx2, (2, 5, D), dtype=jnp.float32)
    out2 = jax.block_until_ready(layer_norm(x2, mean_scale, std_scale))
    ref2 = _reference(x2, mean_scale, std_scale)
    assert out2.shape == x2.shape, out2.shape
    assert jnp.allclose(out2, ref2, atol=1e-4, rtol=1e-4), "mismatch (case 2)"

    print("KERNEL_OK")
</pallas_src>

<mosaic_0001>
module attributes {stable_mosaic.version = 11 : i64} {
  func.func @ln_kernel(%arg0: i32, %arg1: memref<8x512xf32, #tpu.memory_space<vmem>>, %arg2: memref<1x512xf32, #tpu.memory_space<vmem>>, %arg3: memref<1x512xf32, #tpu.memory_space<vmem>>, %arg4: memref<8x512xf32, #tpu.memory_space<vmem>>) attributes {dimension_semantics = [#tpu.dimension_semantics<parallel>], iteration_bounds = array<i64: 2>, scalar_prefetch = 0 : i64, scratch_operands = 0 : i64, tpu.core_type = #tpu.core_type<tc>, window_params = [{transform_indices = @transform_0, window_bounds = array<i64: 8, 512>}, {pipeline_mode = #tpu.pipeline_mode<synchronous>, transform_indices = @transform_1, window_bounds = array<i64: 1, 512>}, {pipeline_mode = #tpu.pipeline_mode<synchronous>, transform_indices = @transform_2, window_bounds = array<i64: 1, 512>}, {transform_indices = @transform_3, window_bounds = array<i64: 8, 512>}]} {
    %c0 = arith.constant 0 : index
    %c0_0 = arith.constant 0 : index
    %0 = vector.load %arg1[%c0, %c0_0] : memref<8x512xf32, #tpu.memory_space<vmem>>, vector<8x512xf32>
    %cst = arith.constant dense<0.000000e+00> : vector<8xf32>
    %1 = vector.multi_reduction <add>, %0, %cst [1] : vector<8x512xf32> to vector<8xf32>
    %2 = vector.shape_cast %1 : vector<8xf32> to vector<8x1xf32>
    %cst_1 = arith.constant 0.001953125 : f32
    %3 = vector.broadcast %cst_1 : f32 to vector<8x1xf32>
    %4 = arith.mulf %2, %3 : vector<8x1xf32>
    %5 = vector.broadcast %4 : vector<8x1xf32> to vector<8x512xf32>
    %6 = arith.subf %0, %5 : vector<8x512xf32>
    %7 = arith.mulf %6, %6 : vector<8x512xf32>
    %cst_2 = arith.constant dense<0.000000e+00> : vector<8xf32>
    %8 = vector.multi_reduction <add>, %7, %cst_2 [1] : vector<8x512xf32> to vector<8xf32>
    %9 = vector.shape_cast %8 : vector<8xf32> to vector<8x1xf32>
    %cst_3 = arith.constant 0.00195694715 : f32
    %10 = vector.broadcast %cst_3 : f32 to vector<8x1xf32>
    %11 = arith.mulf %9, %10 : vector<8x1xf32>
    %12 = math.sqrt %11 : vector<8x1xf32>
    %cst_4 = arith.constant 9.99999971E-10 : f32
    %13 = vector.broadcast %cst_4 : f32 to vector<8x1xf32>
    %14 = arith.addf %12, %13 : vector<8x1xf32>
    %15 = tpu.reciprocal %14 {approx = true} : vector<8x1xf32> -> vector<8x1xf32>
    %16 = arith.mulf %14, %15 : vector<8x1xf32>
    %cst_5 = arith.constant 2.000000e+00 : f32
    %17 = vector.broadcast %cst_5 : f32 to vector<8x1xf32>
    %18 = arith.subf %17, %16 : vector<8x1xf32>
    %19 = arith.mulf %15, %18 : vector<8x1xf32>
    %c0_6 = arith.constant 0 : index
    %c0_7 = arith.constant 0 : index
    %20 = vector.load %arg3[%c0_6, %c0_7] : memref<1x512xf32, #tpu.memory_space<vmem>>, vector<1x512xf32>
    %21 = vector.broadcast %19 : vector<8x1xf32> to vector<8x512xf32>
    %22 = arith.mulf %6, %21 : vector<8x512xf32>
    %23 = vector.broadcast %20 : vector<1x512xf32> to vector<8x512xf32>
    %24 = arith.mulf %23, %22 : vector<8x512xf32>
    %c0_8 = arith.constant 0 : index
    %c0_9 = arith.constant 0 : index
    %25 = vector.load %arg2[%c0_8, %c0_9] : memref<1x512xf32, #tpu.memory_space<vmem>>, vector<1x512xf32>
    %26 = vector.broadcast %25 : vector<1x512xf32> to vector<8x512xf32>
    %27 = arith.addf %24, %26 : vector<8x512xf32>
    %c0_10 = arith.constant 0 : index
    %c0_11 = arith.constant 0 : index
    %28 = vector.load %arg4[%c0_10, %c0_11] : memref<8x512xf32, #tpu.memory_space<vmem>>, vector<8x512xf32>
    tpu.vector_store %arg4[%c0_10, %c0_11], %27 {strides = array<i32>} : memref<8x512xf32, #tpu.memory_space<vmem>>, vector<8x512xf32>,
    return
  }
  func.func @transform_0(%arg0: i32) -> (i32, i32) {
    %c0_i32 = arith.constant 0 : i32
    %c0_i32_0 = arith.constant 0 : i32
    return %arg0, %c0_i32 : i32, i32
  }
  func.func @transform_1(%arg0: i32) -> (i32, i32) {
    %c0_i32 = arith.constant 0 : i32
    %c0_i32_0 = arith.constant 0 : i32
    %c0_i32_1 = arith.constant 0 : i32
    return %c0_i32, %c0_i32_0 : i32, i32
  }
  func.func @transform_2(%arg0: i32) -> (i32, i32) {
    %c0_i32 = arith.constant 0 : i32
    %c0_i32_0 = arith.constant 0 : i32
    %c0_i32_1 = arith.constant 0 : i32
    return %c0_i32, %c0_i32_0 : i32, i32
  }
  func.func @transform_3(%arg0: i32) -> (i32, i32) {
    %c0_i32 = arith.constant 0 : i32
    %c0_i32_0 = arith.constant 0 : i32
    return %arg0, %c0_i32 : i32, i32
  }
}

</mosaic_0001>

<llo_original>
// kernel: tpu_custom_call.1
$region0: #{tpu_custom_call.1}
  #allocation0 [shape = 'u32[]', space=smem, size = 0x4, offset = 0x4, fixed_abs, tag = 'smem constant byte address 0x4 - core index']
  #allocation1 [shape = 'u32[72,128]{1,0:T(1,128)}', space=vmem, size = 0x9000, scoped, tag = 'internal scratch']
  %s0 = inlined_call_operand.hbm [shape: f32[16,512], index: 0, kind: input, shape index: {}]
  %s1 = inlined_call_operand.hbm [shape: f32[1,512], index: 1, kind: input, shape index: {}]
  %s2 = inlined_call_operand.hbm [shape: f32[1,512], index: 2, kind: input, shape index: {}]
  %s3 = inlined_call_operand.hbm [shape: f32[16,512], index: 3, kind: output, shape index: {}]
  %s4 = sld [smem:[#allocation0]]
  $region57: #{tpu_custom_call.1} parent=0
    _
  %s6 = ssub.s32 1, %s4
  %s7 = scalar_select 0, %s6, %s4
  $region1: #{tpu_custom_call.1} parent=0
    #allocation2 [shape = 'u8[32768]{0}', space=vmem, size = 0x8000, scoped, tag = 'input window, operand 0']
    #allocation3 [shape = 's32[2]{0}', space=sflag, size = 0x8, scoped, tag = 'scoped memory for tpu_custom_call.1']
    #allocation4 [shape = 's32[2]{0}', space=sflag, size = 0x8, scoped, tag = 'scoped memory for tpu_custom_call.1']
    #allocation5 [shape = 'u8[2048]{0}', space=vmem, size = 0x800, scoped, tag = 'input window, operand 1, single buffered']
    #allocation6 [shape = 's32[1]{0}', space=sflag, size = 0x4, scoped, tag = 'scoped memory for tpu_custom_call.1']
    #allocation7 [shape = 'u8[2048]{0}', space=vmem, size = 0x800, scoped, tag = 'input window, operand 2, single buffered']
    #allocation8 [shape = 'u8[32768]{0}', space=vmem, size = 0x8000, scoped, tag = 'output window, operand 0']
    %8 = vsyncpa [#allocation3], 0
    %s9 = scalar_lea.sflag [#allocation3], 1
    %10 = vsyncpa %s9, 0
    %11 = vsyncpa [#allocation6], 0
    %12 = vsyncpa [#allocation4], 0
    %s13 = scalar_lea.sflag [#allocation4], 1
    %14 = vsyncpa %s13, 0
    loop: start=0, step=1, limit=4
    $region2: #{tpu_custom_call.1} parent=1 // loop_pre_header
      _
    $region3: #{tpu_custom_call.1} parent=1 // loop_header
      %s16 = sphi 0, %s20
      %p17 = scmp.ge.s32.totalorder %s16, 4
      %s26 = sphi 0, %s28
      %s29 = sphi 0, %s26
      %s30 = sphi 0, %s29
      %s46 = sphi 0, %s30
      %s50 = sphi 0, %s50
      %s52 = sphi 0, %s50
      %s53 = sphi 0, %s52
      %s67 = sphi 0, %s53
      %s71 = sphi 0, %s71
      %s73 = sphi 0, %s71
      %s74 = sphi 0, %s73
      %s88 = sphi 0, %s74
      %s94 = sphi 0, %s96
      %s97 = sphi 0, %s94
      %s98 = sphi 0, %s97
      %s114 = sphi 0, %s98
    $region4: #{tpu_custom_call.1} parent=1 // loop_header_branch
      %19 = sbr.rel (%p17) target = $region8
    $region5: #{tpu_custom_call.1} parent=1 // loop_body
      %s21 = ssub.s32 %s16, 1
      %s22 = ssub.s32 %s16, 2
      %s23 = sadd.s32 %s16, 1
      %s24 = ssub.s32 %s16, %s23
      %p25 = scmp.eq.s32.totalorder %s24, 0
      %s27 = sadd.s32 %s26, 1
      %s28 = scalar_select %p25, %s26, %s27
      %p31 = pneg %p25
      %p32 = scmp.eq.s32.totalorder %s16, 1
      %p33 = por %p31, %p32
      %p34 = scmp.ne.s32.totalorder %s26, %s29
      %p35 = scmp.eq.s32.totalorder %s16, 0
      %p36 = por %p34, %p35
      %p37 = scmp.ne.s32.totalorder %s26, %s29
      %p38 = scmp.eq.s32.totalorder %s21, 1
      %p39 = por %p37, %p38
      %p40 = scmp.ne.s32.totalorder %s29, %s30
      %p41 = scmp.eq.s32.totalorder %s21, 0
      %p42 = por %p40, %p41
      %p43 = scmp.ne.s32.totalorder %s29, %s30
      %p44 = scmp.eq.s32.totalorder %s22, 1
      %p45 = por %p43, %p44
      %p47 = scmp.ne.s32.totalorder %s30, %s46
      %p48 = scmp.eq.s32.totalorder %s22, 0
      %p49 = por %p47, %p48
      %s51 = sadd.s32 %s50, 1
      %p54 = scmp.eq.s32.totalorder %s16, 1
      %p55 = scmp.ne.s32.totalorder %s50, %s52
      %p56 = scmp.eq.s32.totalorder %s16, 0
      %p57 = por %p55, %p56
      %p58 = scmp.ne.s32.totalorder %s50, %s52
      %p59 = scmp.eq.s32.totalorder %s21, 1
      %p60 = por %p58, %p59
      %p61 = scmp.ne.s32.totalorder %s52, %s53
      %p62 = scmp.eq.s32.totalorder %s21, 0
      %p63 = por %p61, %p62
      %p64 = scmp.ne.s32.totalorder %s52, %s53
      %p65 = scmp.eq.s32.totalorder %s22, 1
      %p66 = por %p64, %p65
      %p68 = scmp.ne.s32.totalorder %s53, %s67
      %p69 = scmp.eq.s32.totalorder %s22, 0
      %p70 = por %p68, %p69
      %s72 = sadd.s32 %s71, 1
      %p75 = scmp.eq.s32.totalorder %s16, 1
      %p76 = scmp.ne.s32.totalorder %s71, %s73
      %p77 = scmp.eq.s32.totalorder %s16, 0
      %p78 = por %p76, %p77
      %p79 = scmp.ne.s32.totalorder %s71, %s73
      %p80 = scmp.eq.s32.totalorder %s21, 1
      %p81 = por %p79, %p80
      %p82 = scmp.ne.s32.totalorder %s73, %s74
      %p83 = scmp.eq.s32.totalorder %s21, 0
      %p84 = por %p82, %p83
      %p85 = scmp.ne.s32.totalorder %s73, %s74
      %p86 = scmp.eq.s32.totalorder %s22, 1
      %p87 = por %p85, %p86
      %p89 = scmp.ne.s32.totalorder %s74, %s88
      %p90 = scmp.eq.s32.totalorder %s22, 0
      %p91 = por %p89, %p90
      %s92 = ssub.s32 %s16, %s23
      %p93 = scmp.eq.s32.totalorder %s92, 0
      %s95 = sadd.s32 %s94, 1
      %s96 = scalar_select %p93, %s94, %s95
      %p99 = pneg %p93
      %p100 = scmp.eq.s32.totalorder %s16, 1
      %p101 = por %p99, %p100
      %p102 = scmp.ne.s32.totalorder %s94, %s97
      %p103 = scmp.eq.s32.totalorder %s16, 0
      %p104 = por %p102, %p103
      %p105 = scmp.ne.s32.totalorder %s94, %s97
      %p106 = scmp.eq.s32.totalorder %s21, 1
      %p107 = por %p105, %p106
      %p108 = scmp.ne.s32.totalorder %s97, %s98
      %p109 = scmp.eq.s32.totalorder %s21, 0
      %p110 = por %p108, %p109
      %p111 = scmp.ne.s32.totalorder %s97, %s98
      %p112 = scmp.eq.s32.totalorder %s22, 1
      %p113 = por %p111, %p112
      %p115 = scmp.ne.s32.totalorder %s98, %s114
      %p116 = scmp.eq.s32.totalorder %s22, 0
      %p117 = por %p115, %p116
      %p118 = scmp.le.s32.totalorder 1, %s16
      %p119 = scmp.lt.s32.totalorder %s16, 3
      %p120 = pnand %p118, %p119
      %p121 = pneg %p120
      // Predicated region
      $region9: #{tpu_custom_call.1} parent=5 // pred_check
        _
      $region10: #{tpu_custom_call.1} parent=5 // pred_check_branch
        %123 = sbr.rel (%p120) target = $region12
      $region11: #{tpu_custom_call.1} parent=5 // pred_region
        %s124 = ssub.s32 %s16, 1
        // Predicated region
        $region13: #{tpu_custom_call.1} parent=11 // pred_check
          %p125 = pneg %p63
        $region14: #{tpu_custom_call.1} parent=11 // pred_check_branch
          %127 = sbr.rel (%p125) target = $region16
        $region15: #{tpu_custom_call.1} parent=11 // pred_region
          %129 = vsyncadd [#allocation6], 0
          %s131 = sshll.u32 %s1, 4
          %s132 = int_to_ptr.hbm [resolvable:$true] %s131
          %s133 = sshll.u32 [#allocation5], 4
          %s134 = int_to_ptr.vmem [resolvable:$true] %s133
          %136 = dma.hbm_to_vmem [thread:$0]  %s132, 64, %s134, [#allocation6]
        $region16: #{tpu_custom_call.1} parent=11 // pred_fallthru
          _
        // Predicated region
        $region17: #{tpu_custom_call.1} parent=11 // pred_check
          %p137 = pneg %p84
        $region18: #{tpu_custom_call.1} parent=11 // pred_check_branch
          %139 = sbr.rel (%p137) target = $region20
        $region19: #{tpu_custom_call.1} parent=11 // pred_region
          %141 = vsyncadd [#allocation6], 0
          %s143 = sshll.u32 %s2, 4
          %s144 = int_to_ptr.hbm [resolvable:$true] %s143
          %s145 = sshll.u32 [#allocation7], 4
          %s146 = int_to_ptr.vmem [resolvable:$true] %s145
          %148 = dma.hbm_to_vmem [thread:$0]  %s144, 64, %s146, [#allocation6]
        $region20: #{tpu_custom_call.1} parent=11 // pred_fallthru
          _
      $region12: #{tpu_custom_call.1} parent=5 // pred_fallthru
        _
      %p149 = scmp.lt.s32.totalorder %s16, 2
      // Predicated region
      $region21: #{tpu_custom_call.1} parent=5 // pred_check
        %p150 = pneg %p149
      $region22: #{tpu_custom_call.1} parent=5 // pred_check_branch
        %152 = sbr.rel (%p150) target = $region24
      $region23: #{tpu_custom_call.1} parent=5 // pred_region
        // Predicated region
        $region25: #{tpu_custom_call.1} parent=23 // pred_check
          %p153 = pneg %p36
        $region26: #{tpu_custom_call.1} parent=23 // pred_check_branch
          %155 = sbr.rel (%p153) target = $region28
        $region27: #{tpu_custom_call.1} parent=23 // pred_region
          %s156 = sand.u32 %s26, 1
          %s157 = scalar_lea.sflag [#allocation3], %s156
          %s158 = sand.u32 %s26, 1
          %s159 = smul.addr %s158, 32
          %s160 = scalar_lea.vmem [#allocation2], %s159
          %162 = vsyncadd %s157, 0
          %s163 = smul.addr %s16, 4
          %s164 = smul.addr %s163, 8
          %s165 = scalar_lea.hbm %s0, %s164
          %s167 = sshll.u32 %s165, 4
          %s168 = int_to_ptr.hbm [resolvable:$true] %s167
          %s169 = sshll.u32 %s160, 4
          %s170 = int_to_ptr.vmem [resolvable:$true] %s169
          %172 = dma.hbm_to_vmem [thread:$0]  %s168, 512, %s170, %s157
        $region28: #{tpu_custom_call.1} parent=23 // pred_fallthru
          _
      $region24: #{tpu_custom_call.1} parent=5 // pred_fallthru
        _
      %p173 = scmp.le.s32.totalorder 1, %s16
      %p174 = scmp.lt.s32.totalorder %s16, 3
      %p175 = pnand %p173, %p174
      %p176 = pneg %p175
      // Predicated region
      $region29: #{tpu_custom_call.1} parent=5 // pred_check
        _
      $region30: #{tpu_custom_call.1} parent=5 // pred_check_branch
        %178 = sbr.rel (%p175) target = $region32
      $region31: #{tpu_custom_call.1} parent=5 // pred_region
        %s179 = ssub.s32 %s16, 1
        %s180 = sand.u32 %s29, 1
        %s181 = scalar_lea.sflag [#allocation3], %s180
        %s182 = sand.u32 %s29, 1
        %s183 = smul.addr %s182, 32
        %s184 = scalar_lea.vmem [#allocation2], %s183
        // Predicated region
        $region33: #{tpu_custom_call.1} parent=31 // pred_check
          %p185 = pneg %p42
        $region34: #{tpu_custom_call.1} parent=31 // pred_check_branch
          %187 = sbr.rel (%p185) target = $region36
        $region35: #{tpu_custom_call.1} parent=31 // pred_region
          %189 = dma.done %s181, 512
        $region36: #{tpu_custom_call.1} parent=31 // pred_fallthru
          _
        // Predicated region
        $region37: #{tpu_custom_call.1} parent=31 // pred_check
          %p190 = pneg %p63
        $region38: #{tpu_custom_call.1} parent=31 // pred_check_branch
          %192 = sbr.rel (%p190) target = $region40
        $region39: #{tpu_custom_call.1} parent=31 // pred_region
          %194 = dma.done [#allocation6], 64
        $region40: #{tpu_custom_call.1} parent=31 // pred_fallthru
          _
        // Predicated region
        $region41: #{tpu_custom_call.1} parent=31 // pred_check
          %p195 = pneg %p84
        $region42: #{tpu_custom_call.1} parent=31 // pred_check_branch
          %197 = sbr.rel (%p195) target = $region44
        $region43: #{tpu_custom_call.1} parent=31 // pred_region
          %199 = dma.done [#allocation6], 64
        $region44: #{tpu_custom_call.1} parent=31 // pred_fallthru
          _
        %s200 = sand.u32 %s29, 1
        %s201 = scalar_lea.sflag [#allocation3], %s200
        %s202 = sand.u32 %s29, 1
        %s203 = smul.addr %s202, 32
        %s204 = scalar_lea.vmem [#allocation2], %s203
        %p205 = pneg %p42
        %p206 = pneg %p39
        %p207 = pneg %p63
        %p208 = pneg %p60
        %p209 = pneg %p84
        %p210 = pneg %p81
        %p211 = pneg %p110
        %p212 = pneg %p107
        %s213 = sand.u32 %s97, 1
        %s214 = scalar_lea.sflag [#allocation4], %s213
        %s215 = sand.u32 %s97, 1
        %s216 = smul.addr %s215, 32
        %s217 = scalar_lea.vmem [#allocation8], %s216
        %v218 = vld [vmem:[%s184] sm:$0xff]
        %v219 = vld [vmem:[%s184 + $0x8] sm:$0xff]
        %v220 = vld [vmem:[%s184 + $0x10] sm:$0xff]
        %v221 = vld [vmem:[%s184 + $0x18] sm:$0xff]
        %v222 = vadd.f32 %v218, %v219
        %v223 = vadd.f32 %v222, %v220
        %v224 = vadd.f32 %v223, %v221
        %225 = vadd.xlane.f32.xlu0 %v224
        %v226 = vpop.xlane.xlu0 %225
        %v227 = vmul.f32 %v226, 0.001953125
        %v228 = vsub.f32 %v218, %v227
        %v229 = vsub.f32 %v219, %v227
        %v230 = vsub.f32 %v220, %v227
        %v231 = vsub.f32 %v221, %v227
        %v232 = vmul.f32 %v228, %v228
        %v233 = vmul.f32 %v229, %v229
        %v234 = vmul.f32 %v230, %v230
        %v235 = vmul.f32 %v231, %v231
        %v236 = vadd.f32 %v232, %v233
        %v237 = vadd.f32 %v236, %v234
        %v238 = vadd.f32 %v237, %v235
        %239 = vadd.xlane.f32.xlu0 %v238
        %v240 = vpop.xlane.xlu0 %239
        %v241 = vmul.f32 %v240, 0.0019569471
        %v242 = vrsqrt.pop %v241
        %v243 = vmul.f32 %v242, %v241
        %v244 = vmul.f32 %v243, %v242
        %v245 = vmul.f32 0.5, %v244
        %v246 = vsub.f32 1.5, %v245
        %v247 = vmul.f32 %v242, %v246
        %v248 = vmul.f32 %v241, %v247
        %vm249 = vcmp.eq.f32.partialorder %v241, inf
        %v250 = vsel %vm249, %v241, %v248
        %vm251 = vcmp.eq.f32.partialorder %v241, 0.0
        %v252 = vand.u32 %v241, 2147483648
        %v253 = vsel %vm251, %v252, %v250
        %v254 = vadd.f32 %v253, 1e-09
        %v255 = vrcp.pop %v254
        %v256 = vmul.f32 %v254, %v255
        %v257 = vsub.f32 2.0, %v256
        %v258 = vmul.f32 %v255, %v257
        %v259 = vld [vmem:[#allocation7] sm:$0xf]
        %v260 = vmul.f32 %v228, %v258
        %v261 = vmul.f32 %v229, %v258
        %v262 = vmul.f32 %v230, %v258
        %v263 = vmul.f32 %v231, %v258
        %v265 = vperm.slane %v259, 0
        %v266 = vperm.slane %v259, 1
        %v267 = vperm.slane %v259, 2
        %v268 = vperm.slane %v259, 3
        %v273 = vmul.f32 %v265, %v260
        %v274 = vmul.f32 %v266, %v261
        %v275 = vmul.f32 %v267, %v262
        %v276 = vmul.f32 %v268, %v263
        %v277 = vld [vmem:[#allocation5] sm:$0xf]
        %v279 = vperm.slane %v277, 0
        %v280 = vperm.slane %v277, 1
        %v281 = vperm.slane %v277, 2
        %v282 = vperm.slane %v277, 3
        %v287 = vadd.f32 %v273, %v279
        %v288 = vadd.f32 %v274, %v280
        %v289 = vadd.f32 %v275, %v281
        %v290 = vadd.f32 %v276, %v282
        %291 = vst [vmem:[%s217] sm:$0xff] %v287
        %292 = vst [vmem:[%s217 + $0x8] sm:$0xff] %v288
        %293 = vst [vmem:[%s217 + $0x10] sm:$0xff] %v289
        %294 = vst [vmem:[%s217 + $0x18] sm:$0xff] %v290
        %s295 = sand.u32 %s97, 1
        %s296 = scalar_lea.sflag [#allocation4], %s295
        %s297 = sand.u32 %s97, 1
        %s298 = smul.addr %s297, 32
        %s299 = scalar_lea.vmem [#allocation8], %s298
        // Predicated region
        $region45: #{tpu_custom_call.1} parent=31 // pred_check
          %p300 = pneg %p107
        $region46: #{tpu_custom_call.1} parent=31 // pred_check_branch
          %302 = sbr.rel (%p300) target = $region48
        $region47: #{tpu_custom_call.1} parent=31 // pred_region
          %304 = vsyncadd %s296, 0
          %s305 = smul.addr %s21, 4
          %s306 = smul.addr %s305, 8
          %s307 = scalar_lea.hbm %s3, %s306
          %s309 = sshll.u32 %s299, 4
          %s310 = int_to_ptr.vmem [resolvable:$true] %s309
          %s311 = sshll.u32 %s307, 4
          %s312 = int_to_ptr.hbm [resolvable:$true] %s311
          %314 = dma.vmem_to_hbm [thread:$0]  %s310, 512, %s312, %s296
        $region48: #{tpu_custom_call.1} parent=31 // pred_fallthru
          _
      $region32: #{tpu_custom_call.1} parent=5 // pred_fallthru
        _
      %p315 = scmp.le.s32.totalorder 2, %s16
      // Predicated region
      $region49: #{tpu_custom_call.1} parent=5 // pred_check
        %p316 = pneg %p315
      $region50: #{tpu_custom_call.1} parent=5 // pred_check_branch
        %318 = sbr.rel (%p316) target = $region52
      $region51: #{tpu_custom_call.1} parent=5 // pred_region
        %s319 = ssub.s32 %s16, 2
        // Predicated region
        $region53: #{tpu_custom_call.1} parent=51 // pred_check
          %p320 = pneg %p113
        $region54: #{tpu_custom_call.1} parent=51 // pred_check_branch
          %322 = sbr.rel (%p320) target = $region56
        $region55: #{tpu_custom_call.1} parent=51 // pred_region
          %s323 = sand.u32 %s98, 1
          %s324 = scalar_lea.sflag [#allocation4], %s323
          %s325 = sand.u32 %s98, 1
          %s326 = smul.addr %s325, 32
          %s327 = scalar_lea.vmem [#allocation8], %s326
          %329 = dma.done %s324, 512
        $region56: #{tpu_custom_call.1} parent=51 // pred_fallthru
          _
      $region52: #{tpu_custom_call.1} parent=5 // pred_fallthru
        _
    $region6: #{tpu_custom_call.1} parent=1 // loop_footer
      %s20 = sadd.s32 1, %s16
    $region7: #{tpu_custom_call.1} parent=1 // loop_footer_branch
      %15 = sbr.rel target = $region3
    $region8: #{tpu_custom_call.1} parent=1 // loop_exit
      _
    %330 = vsyncpa [#allocation3], 1
    %s331 = scalar_lea.sflag [#allocation3], 1
    %332 = vsyncpa %s331, 1
    %333 = vsyncpa [#allocation6], 1
    %334 = vsyncpa [#allocation4], 1
    %s335 = scalar_lea.sflag [#allocation4], 1
    %336 = vsyncpa %s335, 1

</llo_original>
